<compile_context>
chip_gen: v6e
topology: v6e:2x2x1
jax: 0.10.0
libtpu: 0.0.40
codegen_flags: <defaults>
</compile_context>

<pallas_src>
import functools

import jax
import jax.numpy as jnp
from jax.experimental import pallas as pl
from jax.experimental.pallas import tpu as pltpu

_SUBLANE = 8
_LANE = 128


def _round_up(x, m):
    return ((x + m - 1) // m) * m


def _relu(h):
    return jnp.maximum(h, 0.0)


def _fused_mlp_kernel(*refs, n_layers, intermediate_activation, last_activation):
    """Fused MLP: o = act_last(L_n(...act(L_2(act(L_1(x))))...)).

    refs = (x_ref, w1_ref, b1_ref, ..., wN_ref, bN_ref, o_ref)
    x_ref: (TB, IN_pad) f32, wi_ref: (in_i, out_i) f32, bi_ref: (1, out_i) f32,
    o_ref: (TB, OUT_store) f32.
    """
    x_ref = refs[0]
    o_ref = refs[-1]
    param_refs = refs[1:-1]

    h = x_ref[...]
    for i in range(n_layers):
        w = param_refs[2 * i][...]
        b = param_refs[2 * i + 1][...]
        h = jnp.dot(h, w, preferred_element_type=jnp.float32) + b
        if i < n_layers - 1:
            h = intermediate_activation(h)
        elif last_activation is not None:
            # Applied in-kernel (free VPU/EUP filler), not as a separate XLA op.
            h = last_activation(h)
    o_ref[...] = h.astype(o_ref.dtype)


def mlp_forward(params, x, *, intermediate_activation=_relu, last_activation=None,
                batch_tile=1024, pad_output_lanes=False):
    """Run the whole MLP as one fused Pallas kernel, tiled over batch.

    params: list of (w_t, b) with w_t: (in, out), b: (1, out).
    x: (batch, in_features) f32, or a single 1-D (in_features,) vector.
    """
    squeeze_out = False
    if x.ndim == 1:                      # mirrors the torch forward on a flat state
        x = x[None, :]
        squeeze_out = True

    n_layers = len(params)
    batch, n_in = x.shape
    n_out = params[-1][0].shape[1]
    assert n_in == params[0][0].shape[0]

    # --- Lane-dense preprocessing: pad input/hidden feature dims to 128 lanes.
    #     The last layer's output dim stays un-padded by default (legal full-dim
    #     block, and avoids 16x HBM writeback amplification on narrow outputs).
    feat_dims = [params[0][0].shape[0]] + [w.shape[1] for (w, _) in params]
    padded_dims = [_round_up(d, _LANE) for d in feat_dims]
    if not pad_output_lanes:
        padded_dims[-1] = n_out
    padded_params = []
    for i, (w, b) in enumerate(params):
        ip, op = padded_dims[i], padded_dims[i + 1]
        w_p = jnp.pad(w, ((0, ip - w.shape[0]), (0, op - w.shape[1])))
        b_p = jnp.pad(b, ((0, 0), (0, op - b.shape[1])))
        padded_params.append((w_p, b_p))
    n_in_pad = padded_dims[0]
    n_out_store = padded_dims[-1]

    # --- Batch tiling: big tiles to amortize per-step overhead; >=2 (even)
    #     grid steps when batch is non-tiny so v7x's two TCs both get work.
    if batch <= 16:
        tb = _round_up(batch, _SUBLANE)
        n_tiles = 1
    else:
        n_tiles = max(2, pl.cdiv(batch, batch_tile))
        if n_tiles % 2:
            n_tiles += 1
        tb = _round_up(pl.cdiv(batch, n_tiles), _SUBLANE)
        n_tiles = pl.cdiv(batch, tb)
        if n_tiles > 1 and n_tiles % 2:
            n_tiles += 1
    batch_pad = n_tiles * tb

    x_p = x
    if batch_pad != batch or n_in_pad != n_in:
        x_p = jnp.pad(x, ((0, batch_pad - batch), (0, n_in_pad - n_in)))
    grid = (n_tiles,)

    # --- Specs: x/o tiled over batch; every weight/bias is one resident block.
    in_specs = [pl.BlockSpec((tb, n_in_pad), lambda i: (i, 0))]
    flat_params = []
    for (w_p, b_p) in padded_params:
        # Constant index_map -> DMA'd once, resident across all batch tiles.
        # (Default double-buffering still allocates each twice; negligible here.)
        in_specs.append(pl.BlockSpec(w_p.shape, lambda i: (0, 0)))
        in_specs.append(pl.BlockSpec(b_p.shape, lambda i: (0, 0)))
        flat_params.extend((w_p, b_p))
    out_spec = pl.BlockSpec((tb, n_out_store), lambda i: (i, 0))

    # --- Explicit VMEM budget: double-buffered x/out tiles + 2x params + slack.
    #     Capped at 64 MiB so a config validated on v5e/v6e stays legal on v7x.
    tile_bytes = tb * (n_in_pad + n_out_store) * 4
    param_bytes = sum(w.size * 4 + b.size * 4 for (w, b) in padded_params)
    vmem_limit = int(min(64 << 20,
                         max(4 * tile_bytes + 4 * param_bytes + (4 << 20),
                             32 << 20)))

    # --- Cost estimate (advisory; counts un-padded work).
    flops = 2 * batch * sum(w.shape[0] * w.shape[1] for (w, _) in params)
    bytes_accessed = (batch * n_in + batch * n_out) * 4 + sum(
        w.size * 4 + b.size * 4 for (w, b) in params)
    cost = pl.CostEstimate(flops=flops, transcendentals=0,
                           bytes_accessed=bytes_accessed)

    kernel = functools.partial(
        _fused_mlp_kernel, n_layers=n_layers,
        intermediate_activation=intermediate_activation,
        last_activation=last_activation)

    out_pad = pl.pallas_call(
        kernel,
        out_shape=jax.ShapeDtypeStruct((batch_pad, n_out_store), jnp.float32),
        grid=grid,
        in_specs=in_specs,
        out_specs=out_spec,
        compiler_params=pltpu.CompilerParams(
            # batch axis is independent -> shard across TCs on v7x megacore.
            dimension_semantics=("parallel",),
            vmem_limit_bytes=vmem_limit,
        ),
        cost_estimate=cost,
    )(x_p, *flat_params)

    out = out_pad[:batch, :n_out]
    if squeeze_out:
        out = out[0]
    return out


def init_mlp_params(key, sizes):
    """Deterministic init mimicking torch.nn.Linear default:
    W, b ~ U(-1/sqrt(fan_in), 1/sqrt(fan_in)).  Weights stored transposed."""
    params = []
    for i in range(len(sizes) - 1):
        n_from, n_to = sizes[i], sizes[i + 1]
        key, kw, kb = jax.random.split(key, 3)
        bound = 1.0 / jnp.sqrt(jnp.float32(n_from))
        w_t = jax.random.uniform(kw, (n_from, n_to), jnp.float32, -bound, bound)
        b = jax.random.uniform(kb, (1, n_to), jnp.float32, -bound, bound)
        params.append((w_t, b))
    return params


def mlp_reference(params, x, last_activation=None):
    """Plain-JAX reference for correctness check."""
    n_layers = len(params)
    h = x
    for i, (w_t, b) in enumerate(params):
        h = h @ w_t + b
        if i < n_layers - 1:
            h = jnp.maximum(h, 0.0)
    if last_activation is not None:
        h = last_activation(h)
    return h


# TODO(synk): training-side methods of the torch module (MSELoss, Adam update,
# predict/values_vector helpers, save/load/reset/summary) are out of scope for
# the forward-pass kernel.

if __name__ == "__main__":
    sizes = [16, 32, 32, 8]          # sizes[0]=input dim, sizes[-1]=output dim

    key = jax.random.PRNGKey(0)
    key, kx1, kx2 = jax.random.split(key, 3)
    params = init_mlp_params(key, sizes)

    # 1) Tiny batch (single tile path), identity last activation.
    batch = 2
    x = jax.random.normal(kx1, (batch, sizes[0]), jnp.float32)
    out = jax.block_until_ready(mlp_forward(params, x, last_activation=None))
    ref = mlp_reference(params, x)
    assert out.shape == (batch, sizes[-1])
    assert jnp.allclose(out, ref, atol=1e-5, rtol=1e-5), "mismatch (batch=2)"

    # 2) Larger batch exercising the multi-tile (even-grid) path.
    batch2 = 300
    x2 = jax.random.normal(kx2, (batch2, sizes[0]), jnp.float32)
    out2 = jax.block_until_ready(mlp_forward(params, x2, batch_tile=128))
    ref2 = mlp_reference(params, x2)
    assert out2.shape == (batch2, sizes[-1])
    assert jnp.allclose(out2, ref2, atol=1e-5, rtol=1e-5), "mismatch (batch=300)"

    # 3) In-kernel last activation.
    out3 = jax.block_until_ready(mlp_forward(params, x, last_activation=jnp.tanh))
    ref3 = mlp_reference(params, x, last_activation=jnp.tanh)
    assert jnp.allclose(out3, ref3, atol=1e-5, rtol=1e-5), "mismatch (tanh last act)"

    print("KERNEL_OK")
</pallas_src>

<mosaic_0001>
module attributes {stable_mosaic.version = 11 : i64} {
  func.func @_fused_mlp_kernel(%arg0: i32, %arg1: memref<8x128xf32, #tpu.memory_space<vmem>>, %arg2: memref<128x128xf32, #tpu.memory_space<vmem>>, %arg3: memref<1x128xf32, #tpu.memory_space<vmem>>, %arg4: memref<128x128xf32, #tpu.memory_space<vmem>>, %arg5: memref<1x128xf32, #tpu.memory_space<vmem>>, %arg6: memref<128x8xf32, #tpu.memory_space<vmem>>, %arg7: memref<1x8xf32, #tpu.memory_space<vmem>>, %arg8: memref<8x8xf32, #tpu.memory_space<vmem>>) attributes {dimension_semantics = [#tpu.dimension_semantics<parallel>], iteration_bounds = array<i64: 1>, scalar_prefetch = 0 : i64, scratch_operands = 0 : i64, tpu.core_type = #tpu.core_type<tc>, window_params = [{transform_indices = @transform_0, window_bounds = array<i64: 8, 128>}, {pipeline_mode = #tpu.pipeline_mode<synchronous>, transform_indices = @transform_1, window_bounds = array<i64: 128, 128>}, {pipeline_mode = #tpu.pipeline_mode<synchronous>, transform_indices = @transform_2, window_bounds = array<i64: 1, 128>}, {pipeline_mode = #tpu.pipeline_mode<synchronous>, transform_indices = @transform_3, window_bounds = array<i64: 128, 128>}, {pipeline_mode = #tpu.pipeline_mode<synchronous>, transform_indices = @transform_4, window_bounds = array<i64: 1, 128>}, {pipeline_mode = #tpu.pipeline_mode<synchronous>, transform_indices = @transform_5, window_bounds = array<i64: 128, 8>}, {pipeline_mode = #tpu.pipeline_mode<synchronous>, transform_indices = @transform_6, window_bounds = array<i64: 1, 8>}, {transform_indices = @transform_7, window_bounds = array<i64: 8, 8>}]} {
    %c0 = arith.constant 0 : index
    %c0_0 = arith.constant 0 : index
    %0 = vector.load %arg1[%c0, %c0_0] : memref<8x128xf32, #tpu.memory_space<vmem>>, vector<8x128xf32>
    %c0_1 = arith.constant 0 : index
    %c0_2 = arith.constant 0 : index
    %1 = vector.load %arg2[%c0_1, %c0_2] : memref<128x128xf32, #tpu.memory_space<vmem>>, vector<128x128xf32>
    %c0_3 = arith.constant 0 : index
    %c0_4 = arith.constant 0 : index
    %2 = vector.load %arg3[%c0_3, %c0_4] : memref<1x128xf32, #tpu.memory_space<vmem>>, vector<1x128xf32>
    %cst = arith.constant dense<0.000000e+00> : vector<8x128xf32>
    %3 = tpu.matmul %0, %1, %cst {dimension_numbers = #tpu.dot_dimension_numbers<[1], [0], [0], [1], [0, 0, 1, 1], [], []>} : vector<8x128xf32>, vector<128x128xf32>, vector<8x128xf32> -> vector<8x128xf32>
    %4 = vector.broadcast %2 : vector<1x128xf32> to vector<8x128xf32>
    %5 = arith.addf %3, %4 : vector<8x128xf32>
    %cst_5 = arith.constant 0.000000e+00 : f32
    %6 = vector.broadcast %cst_5 : f32 to vector<8x128xf32>
    %7 = arith.maximumf %5, %6 : vector<8x128xf32>
    %c0_6 = arith.constant 0 : index
    %c0_7 = arith.constant 0 : index
    %8 = vector.load %arg4[%c0_6, %c0_7] : memref<128x128xf32, #tpu.memory_space<vmem>>, vector<128x128xf32>
    %c0_8 = arith.constant 0 : index
    %c0_9 = arith.constant 0 : index
    %9 = vector.load %arg5[%c0_8, %c0_9] : memref<1x128xf32, #tpu.memory_space<vmem>>, vector<1x128xf32>
    %cst_10 = arith.constant dense<0.000000e+00> : vector<8x128xf32>
    %10 = tpu.matmul %7, %8, %cst_10 {dimension_numbers = #tpu.dot_dimension_numbers<[1], [0], [0], [1], [0, 0, 1, 1], [], []>} : vector<8x128xf32>, vector<128x128xf32>, vector<8x128xf32> -> vector<8x128xf32>
    %11 = vector.broadcast %9 : vector<1x128xf32> to vector<8x128xf32>
    %12 = arith.addf %10, %11 : vector<8x128xf32>
    %cst_11 = arith.constant 0.000000e+00 : f32
    %13 = vector.broadcast %cst_11 : f32 to vector<8x128xf32>
    %14 = arith.maximumf %12, %13 : vector<8x128xf32>
    %c0_12 = arith.constant 0 : index
    %c0_13 = arith.constant 0 : index
    %15 = vector.load %arg6[%c0_12, %c0_13] : memref<128x8xf32, #tpu.memory_space<vmem>>, vector<128x8xf32>
    %c0_14 = arith.constant 0 : index
    %c0_15 = arith.constant 0 : index
    %16 = vector.load %arg7[%c0_14, %c0_15] : memref<1x8xf32, #tpu.memory_space<vmem>>, vector<1x8xf32>
    %cst_16 = arith.constant dense<0.000000e+00> : vector<8x8xf32>
    %17 = tpu.matmul %14, %15, %cst_16 {dimension_numbers = #tpu.dot_dimension_numbers<[1], [0], [0], [1], [0, 0, 1, 1], [], []>} : vector<8x128xf32>, vector<128x8xf32>, vector<8x8xf32> -> vector<8x8xf32>
    %18 = vector.broadcast %16 : vector<1x8xf32> to vector<8x8xf32>
    %19 = arith.addf %17, %18 : vector<8x8xf32>
    %c0_17 = arith.constant 0 : index
    %c0_18 = arith.constant 0 : index
    %20 = vector.load %arg8[%c0_17, %c0_18] : memref<8x8xf32, #tpu.memory_space<vmem>>, vector<8x8xf32>
    tpu.vector_store %arg8[%c0_17, %c0_18], %19 {strides = array<i32>} : memref<8x8xf32, #tpu.memory_space<vmem>>, vector<8x8xf32>,
    return
  }
  func.func @transform_0(%arg0: i32) -> (i32, i32) {
    %c0_i32 = arith.constant 0 : i32
    %c0_i32_0 = arith.constant 0 : i32
    return %arg0, %c0_i32 : i32, i32
  }
  func.func @transform_1(%arg0: i32) -> (i32, i32) {
    %c0_i32 = arith.constant 0 : i32
    %c0_i32_0 = arith.constant 0 : i32
    %c0_i32_1 = arith.constant 0 : i32
    return %c0_i32, %c0_i32_0 : i32, i32
  }
  func.func @transform_2(%arg0: i32) -> (i32, i32) {
    %c0_i32 = arith.constant 0 : i32
    %c0_i32_0 = arith.constant 0 : i32
    %c0_i32_1 = arith.constant 0 : i32
    return %c0_i32, %c0_i32_0 : i32, i32
  }
  func.func @transform_3(%arg0: i32) -> (i32, i32) {
    %c0_i32 = arith.constant 0 : i32
    %c0_i32_0 = arith.constant 0 : i32
    %c0_i32_1 = arith.constant 0 : i32
    return %c0_i32, %c0_i32_0 : i32, i32
  }
  func.func @transform_4(%arg0: i32) -> (i32, i32) {
    %c0_i32 = arith.constant 0 : i32
    %c0_i32_0 = arith.constant 0 : i32
    %c0_i32_1 = arith.constant 0 : i32
    return %c0_i32, %c0_i32_0 : i32, i32
  }
  func.func @transform_5(%arg0: i32) -> (i32, i32) {
    %c0_i32 = arith.constant 0 : i32
    %c0_i32_0 = arith.constant 0 : i32
    %c0_i32_1 = arith.constant 0 : i32
    return %c0_i32, %c0_i32_0 : i32, i32
  }
  func.func @transform_6(%arg0: i32) -> (i32, i32) {
    %c0_i32 = arith.constant 0 : i32
    %c0_i32_0 = arith.constant 0 : i32
    %c0_i32_1 = arith.constant 0 : i32
    return %c0_i32, %c0_i32_0 : i32, i32
  }
  func.func @transform_7(%arg0: i32) -> (i32, i32) {
    %c0_i32 = arith.constant 0 : i32
    %c0_i32_0 = arith.constant 0 : i32
    return %arg0, %c0_i32 : i32, i32
  }
}

</mosaic_0001>

<llo_original>
// kernel: tpu_custom_call.1
$region0: #{tpu_custom_call.1}
  #allocation0 [shape = 'u32[]', space=smem, size = 0x4, offset = 0x4, fixed_abs, tag = 'smem constant byte address 0x4 - core index']
  #allocation1 [shape = 'u32[144,128]{1,0:T(1,128)}', space=vmem, size = 0x12000, scoped, tag = 'internal scratch']
  %s0 = inlined_call_operand.vmem [shape: f32[8,128], index: 0, kind: input, shape index: {}]
  %s1 = inlined_call_operand.vmem [shape: f32[128,128], index: 1, kind: input, shape index: {}]
  %s2 = inlined_call_operand.vmem [shape: f32[1,128], index: 2, kind: input, shape index: {}]
  %s3 = inlined_call_operand.hbm [shape: f32[128,128], index: 3, kind: input, shape index: {}]
  %s4 = inlined_call_operand.hbm [shape: f32[1,128], index: 4, kind: input, shape index: {}]
  %s5 = inlined_call_operand.vmem [shape: f32[128,8], index: 5, kind: input, shape index: {}]
  %s6 = inlined_call_operand.vmem [shape: f32[1,8], index: 6, kind: input, shape index: {}]
  %s7 = inlined_call_operand.hbm [shape: f32[8,8], index: 7, kind: output, shape index: {}]
  %s8 = sld [smem:[#allocation0]]
  $region46: #{tpu_custom_call.1} parent=0
    _
  %s10 = ssub.s32 1, %s8
  %s11 = scalar_select 0, %s10, %s8
  $region1: #{tpu_custom_call.1} parent=0
    #allocation2 [shape = 'u8[65536]{0}', space=vmem, size = 0x10000, scoped, tag = 'input window, operand 3, single buffered']
    #allocation3 [shape = 's32[1]{0}', space=sflag, size = 0x4, scoped, tag = 'scoped memory for tpu_custom_call.1']
    #allocation4 [shape = 's32[1]{0}', space=sflag, size = 0x4, scoped, tag = 'scoped memory for tpu_custom_call.1']
    #allocation5 [shape = 'u8[512]{0}', space=vmem, size = 0x400, scoped, tag = 'input window, operand 4, single buffered']
    #allocation6 [shape = 's32[1]{0}', space=sflag, size = 0x4, scoped, tag = 'scoped memory for tpu_custom_call.1']
    #allocation7 [shape = 'u8[4096]{0}', space=vmem, size = 0x1000, scoped, tag = 'output window, operand 0, single buffered']
    %12 = vsyncpa [#allocation3], 0
    %13 = vsyncpa [#allocation6], 0
    %14 = vsyncpa [#allocation4], 0
    // Predicated region
    $region2: #{tpu_custom_call.1} parent=1 // pred_check
      _
    $region3: #{tpu_custom_call.1} parent=1 // pred_check_branch
      %16 = sbr.rel (0) target = $region5
    $region4: #{tpu_custom_call.1} parent=1 // pred_region
      _
    $region5: #{tpu_custom_call.1} parent=1 // pred_fallthru
      _
    // Predicated region
    $region6: #{tpu_custom_call.1} parent=1 // pred_check
      _
    $region7: #{tpu_custom_call.1} parent=1 // pred_check_branch
      %18 = sbr.rel (0) target = $region9
    $region8: #{tpu_custom_call.1} parent=1 // pred_region
      _
    $region9: #{tpu_custom_call.1} parent=1 // pred_fallthru
      _
    // Predicated region
    $region10: #{tpu_custom_call.1} parent=1 // pred_check
      _
    $region11: #{tpu_custom_call.1} parent=1 // pred_check_branch
      %20 = sbr.rel (0) target = $region13
    $region12: #{tpu_custom_call.1} parent=1 // pred_region
      _
    $region13: #{tpu_custom_call.1} parent=1 // pred_fallthru
      _
    // Predicated region
    $region14: #{tpu_custom_call.1} parent=1 // pred_check
      _
    $region15: #{tpu_custom_call.1} parent=1 // pred_check_branch
      %22 = sbr.rel (0) target = $region17
    $region16: #{tpu_custom_call.1} parent=1 // pred_region
      %s24 = ssub.s32 2048, 2048
      %25 = vsyncadd [#allocation3], %s24
      %s26 = sshll.u32 [#allocation2], 4
      %s27 = int_to_ptr.vmem [resolvable:$true] %s26
      %32 = dma.hbm_to_vmem [thread:$0]  %s3, 2048, %s27, [#allocation3], 128, 128, 8
    $region17: #{tpu_custom_call.1} parent=1 // pred_fallthru
      _
    // Predicated region
    $region18: #{tpu_custom_call.1} parent=1 // pred_check
      _
    $region19: #{tpu_custom_call.1} parent=1 // pred_check_branch
      %34 = sbr.rel (0) target = $region21
    $region20: #{tpu_custom_call.1} parent=1 // pred_region
      %s36 = ssub.s32 16, 16
      %37 = vsyncadd [#allocation6], %s36
      %s39 = sshll.u32 [#allocation5], 4
      %s40 = int_to_ptr.vmem [resolvable:$true] %s39
      %42 = dma.hbm_to_vmem [thread:$0]  %s4, 16, %s40, [#allocation6]
    $region21: #{tpu_custom_call.1} parent=1 // pred_fallthru
      _
    // Predicated region
    $region22: #{tpu_custom_call.1} parent=1 // pred_check
      _
    $region23: #{tpu_custom_call.1} parent=1 // pred_check_branch
      %44 = sbr.rel (0) target = $region25
    $region24: #{tpu_custom_call.1} parent=1 // pred_region
      _
    $region25: #{tpu_custom_call.1} parent=1 // pred_fallthru
      _
    // Predicated region
    $region26: #{tpu_custom_call.1} parent=1 // pred_check
      _
    $region27: #{tpu_custom_call.1} parent=1 // pred_check_branch
      %46 = sbr.rel (0) target = $region29
    $region28: #{tpu_custom_call.1} parent=1 // pred_region
      _
    $region29: #{tpu_custom_call.1} parent=1 // pred_fallthru
      _
    // Predicated region
    $region30: #{tpu_custom_call.1} parent=1 // pred_check
      _
    $region31: #{tpu_custom_call.1} parent=1 // pred_check_branch
      %48 = sbr.rel (0) target = $region33
    $region32: #{tpu_custom_call.1} parent=1 // pred_region
      %49 = dma.done [#allocation3], 2048
    $region33: #{tpu_custom_call.1} parent=1 // pred_fallthru
      _
    // Predicated region
    $region34: #{tpu_custom_call.1} parent=1 // pred_check
      _
    $region35: #{tpu_custom_call.1} parent=1 // pred_check_branch
      %51 = sbr.rel (0) target = $region37
    $region36: #{tpu_custom_call.1} parent=1 // pred_region
      %52 = dma.done [#allocation6], 16
    $region37: #{tpu_custom_call.1} parent=1 // pred_fallthru
      _
    %v53 = vld [vmem:[%s0] sm:$0xff]
    %v54 = vld [vmem:[%s1] sm:$0xff]
    %v55 = vld [vmem:[%s1 + $0x8] sm:$0xff]
    %v56 = vld [vmem:[%s1 + $0x10] sm:$0xff]
    %v57 = vld [vmem:[%s1 + $0x18] sm:$0xff]
    %v58 = vld [vmem:[%s1 + $0x20] sm:$0xff]
    %v59 = vld [vmem:[%s1 + $0x28] sm:$0xff]
    %v60 = vld [vmem:[%s1 + $0x30] sm:$0xff]
    %v61 = vld [vmem:[%s1 + $0x38] sm:$0xff]
    %v62 = vld [vmem:[%s1 + $0x40] sm:$0xff]
    %v63 = vld [vmem:[%s1 + $0x48] sm:$0xff]
    %v64 = vld [vmem:[%s1 + $0x50] sm:$0xff]
    %v65 = vld [vmem:[%s1 + $0x58] sm:$0xff]
    %v66 = vld [vmem:[%s1 + $0x60] sm:$0xff]
    %v67 = vld [vmem:[%s1 + $0x68] sm:$0xff]
    %v68 = vld [vmem:[%s1 + $0x70] sm:$0xff]
    %v69 = vld [vmem:[%s1 + $0x78] sm:$0xff]
    %v70 = vld [vmem:[%s2] sm:$0x1]
    %v72 = vlaneseq
    %v73 = vshrl.u32 %v72, 7
    %v74 = vsub.s32 0, %v73
    %v75 = vrot.slane %v70, %v74
    %77 = vmatprep.subr.mxu0 0.0
    %78 = vmatpush1.msra.mxu0 %v69
    %79 = vmatprep.subr.mxu0 0.0
    %80 = vmatpush1.msra.mxu0 %v68
    %81 = vmatprep.subr.mxu0 0.0
    %82 = vmatpush1.msra.mxu0 %v67
    %83 = vmatprep.subr.mxu0 0.0
    %84 = vmatpush1.msra.mxu0 %v66
    %85 = vmatprep.subr.mxu0 0.0
    %86 = vmatpush1.msra.mxu0 %v65
    %87 = vmatprep.subr.mxu0 0.0
    %88 = vmatpush1.msra.mxu0 %v64
    %89 = vmatprep.subr.mxu0 0.0
    %90 = vmatpush1.msra.mxu0 %v63
    %91 = vmatprep.subr.mxu0 0.0
    %92 = vmatpush1.msra.mxu0 %v62
    %93 = vmatprep.subr.mxu0 0.0
    %94 = vmatpush1.msra.mxu0 %v61
    %95 = vmatprep.subr.mxu0 0.0
    %96 = vmatpush1.msra.mxu0 %v60
    %97 = vmatprep.subr.mxu0 0.0
    %98 = vmatpush1.msra.mxu0 %v59
    %99 = vmatprep.subr.mxu0 0.0
    %100 = vmatpush1.msra.mxu0 %v58
    %101 = vmatprep.subr.mxu0 0.0
    %102 = vmatpush1.msra.mxu0 %v57
    %103 = vmatprep.subr.mxu0 0.0
    %104 = vmatpush1.msra.mxu0 %v56
    %105 = vmatprep.subr.mxu0 0.0
    %106 = vmatpush1.msra.mxu0 %v55
    %107 = vmatprep.subr.mxu0 0.0
    %108 = vmatpush1.msra.mxu0 %v54
    %109 = vmatprep.subr.mxu0 0.0
    %110 = vmatpush2.msra.mxu0 0.0
    %111 = vmatprep.subr.mxu0 0.0
    %112 = vmatpush2.msra.mxu0 0.0
    %113 = vmatprep.subr.mxu0 0.0
    %114 = vmatpush2.msra.mxu0 0.0
    %115 = vmatprep.subr.mxu0 0.0
    %116 = vmatpush2.msra.mxu0 0.0
    %117 = vmatprep.subr.mxu0 0.0
    %118 = vmatpush2.msra.mxu0 0.0
    %119 = vmatprep.subr.mxu0 0.0
    %120 = vmatpush2.msra.mxu0 0.0
    %121 = vmatprep.subr.mxu0 0.0
    %122 = vmatpush2.msra.mxu0 0.0
    %123 = vmatprep.subr.mxu0 0.0
    %124 = vmatpush2.msra.mxu0 0.0
    %125 = vmatprep.subr.mxu0 0.0
    %126 = vmatpush2.msra.mxu0 0.0
    %127 = vmatprep.subr.mxu0 0.0
    %128 = vmatpush2.msra.mxu0 0.0
    %129 = vmatprep.subr.mxu0 0.0
    %130 = vmatpush2.msra.mxu0 0.0
    %131 = vmatprep.subr.mxu0 0.0
    %132 = vmatpush2.msra.mxu0 0.0
    %133 = vmatprep.subr.mxu0 0.0
    %134 = vmatpush2.msra.mxu0 0.0
    %135 = vmatprep.subr.mxu0 0.0
    %136 = vmatpush2.msra.mxu0 0.0
    %137 = vmatprep.subr.mxu0 0.0
    %138 = vmatpush2.msra.mxu0 0.0
    %139 = vmatprep.subr.mxu0 0.0
    %140 = vmatpush2.msra.mxu0 0.0
    %141 = vmatprep.mubr.f32.mxu0 0.0
    %142 = vmatmul.mubr.f32.gmra.mxu0 %v53
    %v143 = vpop.f32.mrf.mxu0
    %v144 = vadd.f32 %v75, %v143
    %v145 = vpop.f32.mrf.mxu0
    %146 = vdwg.mxu0
    %v147 = vmax.f32 %v144, 0.0
    %v148 = vld [vmem:[#allocation2] sm:$0xff]
    %v149 = vld [vmem:[#allocation2 + $0x8] sm:$0xff]
    %v150 = vld [vmem:[#allocation2 + $0x10] sm:$0xff]
    %v151 = vld [vmem:[#allocation2 + $0x18] sm:$0xff]
    %v152 = vld [vmem:[#allocation2 + $0x20] sm:$0xff]
    %v153 = vld [vmem:[#allocation2 + $0x28] sm:$0xff]
    %v154 = vld [vmem:[#allocation2 + $0x30] sm:$0xff]
    %v155 = vld [vmem:[#allocation2 + $0x38] sm:$0xff]
    %v156 = vld [vmem:[#allocation2 + $0x40] sm:$0xff]
    %v157 = vld [vmem:[#allocation2 + $0x48] sm:$0xff]
    %v158 = vld [vmem:[#allocation2 + $0x50] sm:$0xff]
    %v159 = vld [vmem:[#allocation2 + $0x58] sm:$0xff]
    %v160 = vld [vmem:[#allocation2 + $0x60] sm:$0xff]
    %v161 = vld [vmem:[#allocation2 + $0x68] sm:$0xff]
    %v162 = vld [vmem:[#allocation2 + $0x70] sm:$0xff]
    %v163 = vld [vmem:[#allocation2 + $0x78] sm:$0xff]
    %v164 = vld [vmem:[#allocation5] sm:$0x1]
    %v166 = vlaneseq
    %v167 = vshrl.u32 %v166, 7
    %v168 = vsub.s32 0, %v167
    %v169 = vrot.slane %v164, %v168
    %171 = vmatprep.subr.mxu0 0.0
    %172 = vmatpush1.msra.mxu0 %v163
    %173 = vmatprep.subr.mxu0 0.0
    %174 = vmatpush1.msra.mxu0 %v162
    %175 = vmatprep.subr.mxu0 0.0
    %176 = vmatpush1.msra.mxu0 %v161
    %177 = vmatprep.subr.mxu0 0.0
    %178 = vmatpush1.msra.mxu0 %v160
    %179 = vmatprep.subr.mxu0 0.0
    %180 = vmatpush1.msra.mxu0 %v159
    %181 = vmatprep.subr.mxu0 0.0
    %182 = vmatpush1.msra.mxu0 %v158
    %183 = vmatprep.subr.mxu0 0.0
    %184 = vmatpush1.msra.mxu0 %v157
    %185 = vmatprep.subr.mxu0 0.0
    %186 = vmatpush1.msra.mxu0 %v156
    %187 = vmatprep.subr.mxu0 0.0
    %188 = vmatpush1.msra.mxu0 %v155
    %189 = vmatprep.subr.mxu0 0.0
    %190 = vmatpush1.msra.mxu0 %v154
    %191 = vmatprep.subr.mxu0 0.0
    %192 = vmatpush1.msra.mxu0 %v153
    %193 = vmatprep.subr.mxu0 0.0
    %194 = vmatpush1.msra.mxu0 %v152
    %195 = vmatprep.subr.mxu0 0.0
    %196 = vmatpush1.msra.mxu0 %v151
    %197 = vmatprep.subr.mxu0 0.0
    %198 = vmatpush1.msra.mxu0 %v150
    %199 = vmatprep.subr.mxu0 0.0
    %200 = vmatpush1.msra.mxu0 %v149
    %201 = vmatprep.subr.mxu0 0.0
    %202 = vmatpush1.msra.mxu0 %v148
    %203 = vmatprep.subr.mxu0 0.0
    %204 = vmatpush2.msra.mxu0 0.0
    %205 = vmatprep.subr.mxu0 0.0
    %206 = vmatpush2.msra.mxu0 0.0
    %207 = vmatprep.subr.mxu0 0.0
    %208 = vmatpush2.msra.mxu0 0.0
    %209 = vmatprep.subr.mxu0 0.0
    %210 = vmatpush2.msra.mxu0 0.0
    %211 = vmatprep.subr.mxu0 0.0
    %212 = vmatpush2.msra.mxu0 0.0
    %213 = vmatprep.subr.mxu0 0.0
    %214 = vmatpush2.msra.mxu0 0.0
    %215 = vmatprep.subr.mxu0 0.0
    %216 = vmatpush2.msra.mxu0 0.0
    %217 = vmatprep.subr.mxu0 0.0
    %218 = vmatpush2.msra.mxu0 0.0
    %219 = vmatprep.subr.mxu0 0.0
    %220 = vmatpush2.msra.mxu0 0.0
    %221 = vmatprep.subr.mxu0 0.0
    %222 = vmatpush2.msra.mxu0 0.0
    %223 = vmatprep.subr.mxu0 0.0
    %224 = vmatpush2.msra.mxu0 0.0
    %225 = vmatprep.subr.mxu0 0.0
    %226 = vmatpush2.msra.mxu0 0.0
    %227 = vmatprep.subr.mxu0 0.0
    %228 = vmatpush2.msra.mxu0 0.0
    %229 = vmatprep.subr.mxu0 0.0
    %230 = vmatpush2.msra.mxu0 0.0
    %231 = vmatprep.subr.mxu0 0.0
    %232 = vmatpush2.msra.mxu0 0.0
    %233 = vmatprep.subr.mxu0 0.0
    %234 = vmatpush2.msra.mxu0 0.0
    %235 = vmatprep.mubr.f32.mxu0 0.0
    %236 = vmatmul.mubr.f32.gmra.mxu0 %v147
    %v237 = vpop.f32.mrf.mxu0
    %v238 = vadd.f32 %v169, %v237
    %v239 = vpop.f32.mrf.mxu0
    %240 = vdwg.mxu0
    %v241 = vmax.f32 %v238, 0.0
    %v242 = vld [vmem:[%s5] sm:$0xff]
    %v243 = vld [vmem:[%s5 + $0x8] sm:$0xff]
    %v244 = vld [vmem:[%s5 + $0x10] sm:$0xff]
    %v245 = vld [vmem:[%s5 + $0x18] sm:$0xff]
    %v246 = vld [vmem:[%s5 + $0x20] sm:$0xff]
    %v247 = vld [vmem:[%s5 + $0x28] sm:$0xff]
    %v248 = vld [vmem:[%s5 + $0x30] sm:$0xff]
    %v249 = vld [vmem:[%s5 + $0x38] sm:$0xff]
    %v250 = vld [vmem:[%s5 + $0x40] sm:$0xff]
    %v251 = vld [vmem:[%s5 + $0x48] sm:$0xff]
    %v252 = vld [vmem:[%s5 + $0x50] sm:$0xff]
    %v253 = vld [vmem:[%s5 + $0x58] sm:$0xff]
    %v254 = vld [vmem:[%s5 + $0x60] sm:$0xff]
    %v255 = vld [vmem:[%s5 + $0x68] sm:$0xff]
    %v256 = vld [vmem:[%s5 + $0x70] sm:$0xff]
    %v257 = vld [vmem:[%s5 + $0x78] sm:$0xff]
    %v258 = vld [vmem:[%s6] sm:$0x1]
    %v260 = vlaneseq
    %v261 = vshrl.u32 %v260, 7
    %v262 = vsub.s32 0, %v261
    %v263 = vrot.slane %v258, %v262
    %265 = vmatprep.subr.mxu0 0.0
    %266 = vmatpush1.msra.mxu0 %v257
    %267 = vmatprep.subr.mxu0 0.0
    %268 = vmatpush1.msra.mxu0 %v256
    %269 = vmatprep.subr.mxu0 0.0
    %270 = vmatpush1.msra.mxu0 %v255
    %271 = vmatprep.subr.mxu0 0.0
    %272 = vmatpush1.msra.mxu0 %v254
    %273 = vmatprep.subr.mxu0 0.0
    %274 = vmatpush1.msra.mxu0 %v253
    %275 = vmatprep.subr.mxu0 0.0
    %276 = vmatpush1.msra.mxu0 %v252
    %277 = vmatprep.subr.mxu0 0.0
    %278 = vmatpush1.msra.mxu0 %v251
    %279 = vmatprep.subr.mxu0 0.0
    %280 = vmatpush1.msra.mxu0 %v250
    %281 = vmatprep.subr.mxu0 0.0
    %282 = vmatpush1.msra.mxu0 %v249
    %283 = vmatprep.subr.mxu0 0.0
    %284 = vmatpush1.msra.mxu0 %v248
    %285 = vmatprep.subr.mxu0 0.0
    %286 = vmatpush1.msra.mxu0 %v247
    %287 = vmatprep.subr.mxu0 0.0
    %288 = vmatpush1.msra.mxu0 %v246
    %289 = vmatprep.subr.mxu0 0.0
    %290 = vmatpush1.msra.mxu0 %v245
    %291 = vmatprep.subr.mxu0 0.0
    %292 = vmatpush1.msra.mxu0 %v244
    %293 = vmatprep.subr.mxu0 0.0
    %294 = vmatpush1.msra.mxu0 %v243
    %295 = vmatprep.subr.mxu0 0.0
    %296 = vmatpush1.msra.mxu0 %v242
    %297 = vmatprep.subr.mxu0 0.0
    %298 = vmatpush2.msra.mxu0 0.0
    %299 = vmatprep.subr.mxu0 0.0
    %300 = vmatpush2.msra.mxu0 0.0
    %301 = vmatprep.subr.mxu0 0.0
    %302 = vmatpush2.msra.mxu0 0.0
    %303 = vmatprep.subr.mxu0 0.0
    %304 = vmatpush2.msra.mxu0 0.0
    %305 = vmatprep.subr.mxu0 0.0
    %306 = vmatpush2.msra.mxu0 0.0
    %307 = vmatprep.subr.mxu0 0.0
    %308 = vmatpush2.msra.mxu0 0.0
    %309 = vmatprep.subr.mxu0 0.0
    %310 = vmatpush2.msra.mxu0 0.0
    %311 = vmatprep.subr.mxu0 0.0
    %312 = vmatpush2.msra.mxu0 0.0
    %313 = vmatprep.subr.mxu0 0.0
    %314 = vmatpush2.msra.mxu0 0.0
    %315 = vmatprep.subr.mxu0 0.0
    %316 = vmatpush2.msra.mxu0 0.0
    %317 = vmatprep.subr.mxu0 0.0
    %318 = vmatpush2.msra.mxu0 0.0
    %319 = vmatprep.subr.mxu0 0.0
    %320 = vmatpush2.msra.mxu0 0.0
    %321 = vmatprep.subr.mxu0 0.0
    %322 = vmatpush2.msra.mxu0 0.0
    %323 = vmatprep.subr.mxu0 0.0
    %324 = vmatpush2.msra.mxu0 0.0
    %325 = vmatprep.subr.mxu0 0.0
    %326 = vmatpush2.msra.mxu0 0.0
    %327 = vmatprep.subr.mxu0 0.0
    %328 = vmatpush2.msra.mxu0 0.0
    %329 = vmatprep.mubr.f32.mxu0 0.0
    %330 = vmatmul.mubr.f32.gmra.mxu0 %v241
    %v331 = vpop.f32.mrf.mxu0
    %v332 = vadd.f32 %v263, %v331
    %v333 = vpop.f32.mrf.mxu0
    %334 = vdwg.mxu0
    %vm335 = vcmask 64512
    %336 = vst.msk [vmem:[#allocation7] sm:$0xff] %vm335, %v332
    // Predicated region
    $region38: #{tpu_custom_call.1} parent=1 // pred_check
      _
    $region39: #{tpu_custom_call.1} parent=1 // pred_check_branch
      %338 = sbr.rel (0) target = $region41
    $region40: #{tpu_custom_call.1} parent=1 // pred_region
      %s340 = ssub.s32 128, 128
      %341 = vsyncadd [#allocation4], %s340
      %s343 = sshll.u32 [#allocation7], 4
      %s344 = int_to_ptr.vmem [resolvable:$true] %s343
      %346 = dma.vmem_to_hbm [thread:$0]  %s344, 128, %s7, [#allocation4]
    $region41: #{tpu_custom_call.1} parent=1 // pred_fallthru
      _
    // Predicated region
    $region42: #{tpu_custom_call.1} parent=1 // pred_check
      _
    $region43: #{tpu_custom_call.1} parent=1 // pred_check_branch
      %348 = sbr.rel (0) target = $region45
    $region44: #{tpu_custom_call.1} parent=1 // pred_region
      %349 = dma.done [#allocation4], 128
    $region45: #{tpu_custom_call.1} parent=1 // pred_fallthru
      _
    %350 = vsyncpa [#allocation3], 1
    %351 = vsyncpa [#allocation6], 1
    %352 = vsyncpa [#allocation4], 1

</llo_original>
